<compile_context>
chip_gen: v7x
topology: tpu7x:2x2x1
jax: 0.10.0
libtpu: 0.0.40
codegen_flags: <defaults>
</compile_context>

<pallas_src>
import functools

import jax
import jax.numpy as jnp
import numpy as np
from jax.experimental import pallas as pl
from jax.experimental.pallas import tpu as pltpu


def _basic_conv_kernel(x_ref, w_ref, shift_ref, o_ref, cols_ref, *,
                       kernel_size, wp, use_act):
    # x_ref:     [Cin, L]          f32, L = N*Hp*Wp; padded input, (n, i, j) flat on lanes
    # w_ref:     [Cout, K*K*Cin]   bf16, BN scale folded; column order (dy, dx, ci)
    # shift_ref: [Cout, 1]         f32, folded BN shift (beta - mean*scale)
    # o_ref:     [Cout, L]         f32 conv output over the full padded grid
    # cols_ref:  [K*K*Cin, L]      f32 VMEM scratch (in-kernel im2col slab)
    K = kernel_size
    cin, L = x_ref.shape
    x = x_ref[...]

    # ---- in-kernel im2col via lane rolls (no HBM traffic, no gathers) ----
    # cols[(dy*K+dx)*Cin + ci, l] = x_pad[ci, l + dy*Wp + dx]
    for dy in range(K):
        for dx in range(K):
            d = dy * wp + dx
            tap = x if d == 0 else pltpu.roll(x, shift=L - d, axis=1)
            t = dy * K + dx
            cols_ref[t * cin:(t + 1) * cin, :] = tap

    # ---- single fused MXU matmul over the whole batch ----
    cols = cols_ref[...].astype(jnp.bfloat16)               # [K*K*Cin, L]
    y = jnp.dot(w_ref[...], cols,
                preferred_element_type=jnp.float32)          # [Cout, L], lane-dense
    y = y + shift_ref[...]                                   # BN affine (scale already in w)
    if use_act:
        y = jnp.maximum(y, 0.0)                              # ReLU (f32 epilogue)
    o_ref[...] = y.astype(o_ref.dtype)


def basic_conv(x_nchw, weight_oihw, scale, shift, *, kernel_size, act=True):
    N, Cin, H, W = x_nchw.shape
    Cout = weight_oihw.shape[0]
    K = kernel_size
    pad = K // 2 if K >= 2 else 0
    Hp, Wp = H + 2 * pad, W + 2 * pad
    # ZeroPad2d(K//2) + valid conv: Ho = H for odd K, H+1 for even K (handled exactly).
    Ho, Wo = Hp - (K - 1), Wp - (K - 1)
    L = N * Hp * Wp

    # ----- wrapper-side prep: touches the input exactly once (no 9x cols in HBM) -----
    x_pad = jnp.pad(x_nchw.astype(jnp.float32),
                    ((0, 0), (0, 0), (pad, pad), (pad, pad)))
    x_flat = x_pad.transpose(1, 0, 2, 3).reshape(Cin, L)     # [Cin, N*Hp*Wp]

    # Weight OIHW -> [Cout, K*K*Cin] matching the cols (dy, dx, ci) order; fold BN scale.
    w_flat = weight_oihw.astype(jnp.float32).transpose(0, 2, 3, 1).reshape(Cout, K * K * Cin)
    w_scaled = (w_flat * scale.reshape(Cout, 1).astype(jnp.float32)).astype(jnp.bfloat16)
    shift2d = shift.reshape(Cout, 1).astype(jnp.float32)

    kernel = functools.partial(_basic_conv_kernel,
                               kernel_size=K, wp=Wp, use_act=act)

    # Single gridless invocation: the whole problem (~130 KB of VMEM) is resident, so
    # per-grid-step overhead would dominate at this size.
    # TODO(synk): production feature-map sizes need a spatial/batch tile grid marked
    # "parallel" in dimension_semantics (2 TCs on v7x), tiles sized against v7x's
    # 64 MiB VMEM (set vmem_limit_bytes, account for double buffering), lane tiles
    # kept as multiples of 128, contraction/Cout tiles grown toward 256 (v6e/v7x MXU)
    # or 128 (v5e), and optionally a bf16 output if the next layer consumes bf16.
    out_flat = pl.pallas_call(
        kernel,
        out_shape=jax.ShapeDtypeStruct((Cout, L), jnp.float32),
        in_specs=[
            pl.BlockSpec(memory_space=pltpu.MemorySpace.VMEM),
            pl.BlockSpec(memory_space=pltpu.MemorySpace.VMEM),
            pl.BlockSpec(memory_space=pltpu.MemorySpace.VMEM),
        ],
        out_specs=pl.BlockSpec(memory_space=pltpu.MemorySpace.VMEM),
        scratch_shapes=[pltpu.VMEM((K * K * Cin, L), jnp.float32)],
    )(x_flat, w_scaled, shift2d)

    # Crop the padded border (garbage there by construction) and restore NCHW.
    out = out_flat.reshape(Cout, N, Hp, Wp)[:, :, :Ho, :Wo]
    return out.transpose(1, 0, 2, 3)                         # [N, Cout, Ho, Wo]


if __name__ == "__main__":
    N, Cin, H, W = 2, 4, 16, 16
    Cout, K = 8, 3
    eps = 1e-5

    key = jax.random.PRNGKey(0)
    kx, kw = jax.random.split(key)
    x = jax.random.normal(kx, (N, Cin, H, W), dtype=jnp.float32)
    # Conv2d weight (bias=False because norm=True -> bias='auto' disables it)
    w = jax.random.normal(kw, (Cout, Cin, K, K), dtype=jnp.float32) * 0.1

    # BatchNorm2d(out_ch) parameters with deterministic running stats.
    # TODO(synk): BatchNorm implemented in eval (running-stats) mode and folded into a
    # per-channel affine; training-mode batch statistics not implemented.
    gamma = 1.0 + 0.1 * jnp.arange(Cout, dtype=jnp.float32)
    beta = 0.05 * jnp.arange(Cout, dtype=jnp.float32)
    running_mean = 0.02 * jnp.arange(Cout, dtype=jnp.float32)
    running_var = 1.0 + 0.03 * jnp.arange(Cout, dtype=jnp.float32)

    scale = gamma / jnp.sqrt(running_var + eps)
    shift = beta - running_mean * scale

    out = basic_conv(x, w, scale, shift, kernel_size=K, act=True)
    out = jax.block_until_ready(out)

    # pure-JAX f32 reference for validation
    conv = jax.lax.conv_general_dilated(
        x, w, window_strides=(1, 1), padding=((K // 2, K // 2), (K // 2, K // 2)),
        dimension_numbers=("NCHW", "OIHW", "NCHW"))
    ref = conv * scale[None, :, None, None] + shift[None, :, None, None]
    ref = jnp.maximum(ref, 0.0)

    assert out.shape == (N, Cout, H, W)
    # bf16 MXU operands with f32 accumulation -> looser tolerance than pure f32.
    np.testing.assert_allclose(np.asarray(out), np.asarray(ref), rtol=5e-2, atol=5e-2)
    print("KERNEL_OK")
</pallas_src>

<mosaic_0001>
module attributes {stable_mosaic.version = 11 : i64} {
  func.func @_basic_conv_kernel(%arg0: memref<4x648xf32, #tpu.memory_space<vmem>>, %arg1: memref<8x36xbf16, #tpu.memory_space<vmem>>, %arg2: memref<8x1xf32, #tpu.memory_space<vmem>>, %arg3: memref<8x648xf32, #tpu.memory_space<vmem>>, %arg4: memref<36x648xf32, #tpu.memory_space<vmem>>) attributes {dimension_semantics = [], scalar_prefetch = 0 : i64, scratch_operands = 1 : i64, tpu.core_type = #tpu.core_type<tc>} {
    %c0 = arith.constant 0 : index
    %c0_0 = arith.constant 0 : index
    %0 = vector.load %arg0[%c0, %c0_0] : memref<4x648xf32, #tpu.memory_space<vmem>>, vector<4x648xf32>
    %c0_1 = arith.constant 0 : index
    %c0_2 = arith.constant 0 : index
    %1 = vector.load %arg4[%c0_1, %c0_2] : memref<36x648xf32, #tpu.memory_space<vmem>>, vector<4x648xf32>
    tpu.vector_store %arg4[%c0_1, %c0_2], %0 {strides = array<i32>} : memref<36x648xf32, #tpu.memory_space<vmem>>, vector<4x648xf32>,
    %c647_i32 = arith.constant 647 : i32
    %2 = tpu.dynamic_rotate %0 by %c647_i32 dim 1 : vector<4x648xf32>, i32 -> vector<4x648xf32>
    %c4 = arith.constant 4 : index
    %c0_3 = arith.constant 0 : index
    %3 = vector.load %arg4[%c4, %c0_3] : memref<36x648xf32, #tpu.memory_space<vmem>>, vector<4x648xf32>
    tpu.vector_store %arg4[%c4, %c0_3], %2 {strides = array<i32>} : memref<36x648xf32, #tpu.memory_space<vmem>>, vector<4x648xf32>,
    %c646_i32 = arith.constant 646 : i32
    %4 = tpu.dynamic_rotate %0 by %c646_i32 dim 1 : vector<4x648xf32>, i32 -> vector<4x648xf32>
    %c8 = arith.constant 8 : index
    %c0_4 = arith.constant 0 : index
    %5 = vector.load %arg4[%c8, %c0_4] : memref<36x648xf32, #tpu.memory_space<vmem>>, vector<4x648xf32>
    tpu.vector_store %arg4[%c8, %c0_4], %4 {strides = array<i32>} : memref<36x648xf32, #tpu.memory_space<vmem>>, vector<4x648xf32>,
    %c630_i32 = arith.constant 630 : i32
    %6 = tpu.dynamic_rotate %0 by %c630_i32 dim 1 : vector<4x648xf32>, i32 -> vector<4x648xf32>
    %c12 = arith.constant 12 : index
    %c0_5 = arith.constant 0 : index
    %7 = vector.load %arg4[%c12, %c0_5] : memref<36x648xf32, #tpu.memory_space<vmem>>, vector<4x648xf32>
    tpu.vector_store %arg4[%c12, %c0_5], %6 {strides = array<i32>} : memref<36x648xf32, #tpu.memory_space<vmem>>, vector<4x648xf32>,
    %c629_i32 = arith.constant 629 : i32
    %8 = tpu.dynamic_rotate %0 by %c629_i32 dim 1 : vector<4x648xf32>, i32 -> vector<4x648xf32>
    %c16 = arith.constant 16 : index
    %c0_6 = arith.constant 0 : index
    %9 = vector.load %arg4[%c16, %c0_6] : memref<36x648xf32, #tpu.memory_space<vmem>>, vector<4x648xf32>
    tpu.vector_store %arg4[%c16, %c0_6], %8 {strides = array<i32>} : memref<36x648xf32, #tpu.memory_space<vmem>>, vector<4x648xf32>,
    %c628_i32 = arith.constant 628 : i32
    %10 = tpu.dynamic_rotate %0 by %c628_i32 dim 1 : vector<4x648xf32>, i32 -> vector<4x648xf32>
    %c20 = arith.constant 20 : index
    %c0_7 = arith.constant 0 : index
    %11 = vector.load %arg4[%c20, %c0_7] : memref<36x648xf32, #tpu.memory_space<vmem>>, vector<4x648xf32>
    tpu.vector_store %arg4[%c20, %c0_7], %10 {strides = array<i32>} : memref<36x648xf32, #tpu.memory_space<vmem>>, vector<4x648xf32>,
    %c612_i32 = arith.constant 612 : i32
    %12 = tpu.dynamic_rotate %0 by %c612_i32 dim 1 : vector<4x648xf32>, i32 -> vector<4x648xf32>
    %c24 = arith.constant 24 : index
    %c0_8 = arith.constant 0 : index
    %13 = vector.load %arg4[%c24, %c0_8] : memref<36x648xf32, #tpu.memory_space<vmem>>, vector<4x648xf32>
    tpu.vector_store %arg4[%c24, %c0_8], %12 {strides = array<i32>} : memref<36x648xf32, #tpu.memory_space<vmem>>, vector<4x648xf32>,
    %c611_i32 = arith.constant 611 : i32
    %14 = tpu.dynamic_rotate %0 by %c611_i32 dim 1 : vector<4x648xf32>, i32 -> vector<4x648xf32>
    %c28 = arith.constant 28 : index
    %c0_9 = arith.constant 0 : index
    %15 = vector.load %arg4[%c28, %c0_9] : memref<36x648xf32, #tpu.memory_space<vmem>>, vector<4x648xf32>
    tpu.vector_store %arg4[%c28, %c0_9], %14 {strides = array<i32>} : memref<36x648xf32, #tpu.memory_space<vmem>>, vector<4x648xf32>,
    %c610_i32 = arith.constant 610 : i32
    %16 = tpu.dynamic_rotate %0 by %c610_i32 dim 1 : vector<4x648xf32>, i32 -> vector<4x648xf32>
    %c32 = arith.constant 32 : index
    %c0_10 = arith.constant 0 : index
    %17 = vector.load %arg4[%c32, %c0_10] : memref<36x648xf32, #tpu.memory_space<vmem>>, vector<4x648xf32>
    tpu.vector_store %arg4[%c32, %c0_10], %16 {strides = array<i32>} : memref<36x648xf32, #tpu.memory_space<vmem>>, vector<4x648xf32>,
    %c0_11 = arith.constant 0 : index
    %c0_12 = arith.constant 0 : index
    %18 = vector.load %arg4[%c0_11, %c0_12] : memref<36x648xf32, #tpu.memory_space<vmem>>, vector<36x648xf32>
    %19 = arith.truncf %18 : vector<36x648xf32> to vector<36x648xbf16>
    %c0_13 = arith.constant 0 : index
    %c0_14 = arith.constant 0 : index
    %20 = vector.load %arg1[%c0_13, %c0_14] : memref<8x36xbf16, #tpu.memory_space<vmem>>, vector<8x36xbf16>
    %cst = arith.constant dense<0.000000e+00> : vector<8x648xf32>
    %21 = tpu.matmul %20, %19, %cst {dimension_numbers = #tpu.dot_dimension_numbers<[1], [0], [0], [1], [0, 0, 1, 1], [], []>} : vector<8x36xbf16>, vector<36x648xbf16>, vector<8x648xf32> -> vector<8x648xf32>
    %c0_15 = arith.constant 0 : index
    %c0_16 = arith.constant 0 : index
    %22 = vector.load %arg2[%c0_15, %c0_16] : memref<8x1xf32, #tpu.memory_space<vmem>>, vector<8x1xf32>
    %23 = vector.broadcast %22 : vector<8x1xf32> to vector<8x648xf32>
    %24 = arith.addf %21, %23 : vector<8x648xf32>
    %cst_17 = arith.constant 0.000000e+00 : f32
    %25 = vector.broadcast %cst_17 : f32 to vector<8x648xf32>
    %26 = arith.maximumf %24, %25 : vector<8x648xf32>
    %c0_18 = arith.constant 0 : index
    %c0_19 = arith.constant 0 : index
    %27 = vector.load %arg3[%c0_18, %c0_19] : memref<8x648xf32, #tpu.memory_space<vmem>>, vector<8x648xf32>
    tpu.vector_store %arg3[%c0_18, %c0_19], %26 {strides = array<i32>} : memref<8x648xf32, #tpu.memory_space<vmem>>, vector<8x648xf32>,
    return
  }
}

</mosaic_0001>

<llo_original>
// kernel: tpu_custom_call.1
$region0: #{tpu_custom_call.1}
  #allocation0 [shape = 'u32[]', space=smem, size = 0x4, offset = 0x4, fixed_abs, tag = 'smem constant byte address 0x4 - core index']
  #allocation1 [shape = 'u32[144,128]{1,0:T(1,128)}', space=vmem, size = 0x12000, scoped, tag = 'internal scratch']
  #allocation2 [shape = 'f32[36,648]{1,0:T(8,128)}', space=vmem, size = 0x1e000, scoped, tag = 'scratch operand']
  %s0 = inlined_call_operand.hbm [shape: f32[4,648], index: 0, kind: input, shape index: {}]
  %s1 = inlined_call_operand.vmem [shape: bf16[8,36], index: 1, kind: input, shape index: {}]
  %s2 = inlined_call_operand.vmem [shape: f32[8,1], index: 2, kind: input, shape index: {}]
  %s3 = inlined_call_operand.hbm [shape: f32[8,648], index: 3, kind: output, shape index: {}]
  %s4 = sld [smem:[#allocation0]]
  $region26: #{tpu_custom_call.1} parent=0
    _
  %s6 = ssub.s32 1, %s4
  %s7 = scalar_select 0, %s6, %s4
  $region1: #{tpu_custom_call.1} parent=0
    #allocation3 [shape = 'u8[12288]{0}', space=vmem, size = 0x3000, scoped, tag = 'input window, operand 0, single buffered']
    #allocation4 [shape = 's32[1]{0}', space=sflag, size = 0x4, scoped, tag = 'scoped memory for tpu_custom_call.1']
    #allocation5 [shape = 's32[1]{0}', space=sflag, size = 0x4, scoped, tag = 'scoped memory for tpu_custom_call.1']
    #allocation6 [shape = 'u8[24576]{0}', space=vmem, size = 0x6000, scoped, tag = 'output window, operand 0, single buffered']
    %8 = vsyncpa [#allocation4], 0
    %9 = vsyncpa [#allocation5], 0
    // Predicated region
    $region2: #{tpu_custom_call.1} parent=1 // pred_check
      _
    $region3: #{tpu_custom_call.1} parent=1 // pred_check_branch
      %11 = sbr.rel (0) target = $region5
    $region4: #{tpu_custom_call.1} parent=1 // pred_region
      %s13 = ssub.s32 384, 384
      %14 = vsyncadd [#allocation4], %s13
      %s16 = sshll.u32 [#allocation3], 4
      %s17 = int_to_ptr.vmem [resolvable:$true] %s16
      %19 = dma.hbm_to_vmem [thread:$0]  %s0, 384, %s17, [#allocation4]
    $region5: #{tpu_custom_call.1} parent=1 // pred_fallthru
      _
    // Predicated region
    $region6: #{tpu_custom_call.1} parent=1 // pred_check
      _
    $region7: #{tpu_custom_call.1} parent=1 // pred_check_branch
      %21 = sbr.rel (0) target = $region9
    $region8: #{tpu_custom_call.1} parent=1 // pred_region
      _
    $region9: #{tpu_custom_call.1} parent=1 // pred_fallthru
      _
    // Predicated region
    $region10: #{tpu_custom_call.1} parent=1 // pred_check
      _
    $region11: #{tpu_custom_call.1} parent=1 // pred_check_branch
      %23 = sbr.rel (0) target = $region13
    $region12: #{tpu_custom_call.1} parent=1 // pred_region
      _
    $region13: #{tpu_custom_call.1} parent=1 // pred_fallthru
      _
    // Predicated region
    $region14: #{tpu_custom_call.1} parent=1 // pred_check
      _
    $region15: #{tpu_custom_call.1} parent=1 // pred_check_branch
      %25 = sbr.rel (0) target = $region17
    $region16: #{tpu_custom_call.1} parent=1 // pred_region
      %26 = dma.done [#allocation4], 384
    $region17: #{tpu_custom_call.1} parent=1 // pred_fallthru
      _
    %v28 = vld [vmem:[#allocation3] sm:$0xff]
    %v29 = vld [vmem:[#allocation3 + $0x8] sm:$0xff]
    %v30 = vld [vmem:[#allocation3 + $0x10] sm:$0xff]
    %v34 = vcombine.high %v28, %v28
    %v35 = vcombine.high %v29, %v29
    %v36 = vcombine.high %v30, %v30
    %40 = vst [vmem:[#allocation2] sm:$0xf] %v28
    %41 = vst [vmem:[#allocation2 + $0x8] sm:$0xf] %v34
    %42 = vst [vmem:[#allocation2 + $0x10] sm:$0xf] %v29
    %43 = vst [vmem:[#allocation2 + $0x18] sm:$0xf] %v35
    %44 = vst [vmem:[#allocation2 + $0x20] sm:$0xf] %v30
    %vm45 = vcmask 60416
    %46 = vst.msk [vmem:[#allocation2 + $0x28] sm:$0xf] %vm45, %v36
    %vm47 = vcmask 1047616
    %48 = vrot.lane.b32.xlu0 %v28, 8
    %v49 = vpop.permute.xlu0 %48
    %v50 = vsel %vm47, %v49, %v36
    %v52 = vrot.slane %v28, 4
    %v53 = vrot.slane %v34, 4
    %v54 = vrot.slane %v29, 4
    %v55 = vrot.slane %v35, 4
    %v56 = vrot.slane %v30, 4
    %v57 = vrot.slane %v50, 4
    %58 = vrot.lane.b32.xlu0 %v52, 127
    %v59 = vpop.permute.xlu0 %58
    %60 = vrot.lane.b32.xlu0 %v53, 127
    %v61 = vpop.permute.xlu0 %60
    %62 = vrot.lane.b32.xlu0 %v54, 127
    %v63 = vpop.permute.xlu0 %62
    %64 = vrot.lane.b32.xlu0 %v55, 127
    %v65 = vpop.permute.xlu0 %64
    %66 = vrot.lane.b32.xlu0 %v56, 127
    %v67 = vpop.permute.xlu0 %66
    %68 = vrot.lane.b32.xlu0 %v57, 127
    %v69 = vpop.permute.xlu0 %68
    %vm70 = vcmask 1039360
    %v71 = vsel %vm70, %v59, %v61
    %v72 = vsel %vm70, %v61, %v63
    %v73 = vsel %vm70, %v63, %v65
    %v74 = vsel %vm70, %v65, %v67
    %v75 = vsel %vm70, %v67, %v69
    %82 = vst [vmem:[#allocation2] sm:$0xf0] %v71
    %83 = vst [vmem:[#allocation2 + $0x8] sm:$0xf0] %v72
    %84 = vst [vmem:[#allocation2 + $0x10] sm:$0xf0] %v73
    %85 = vst [vmem:[#allocation2 + $0x18] sm:$0xf0] %v74
    %86 = vst [vmem:[#allocation2 + $0x20] sm:$0xf0] %v75
    %vm87 = vcmask 64516
    %88 = vst.msk [vmem:[#allocation2 + $0x28] sm:$0xf0] %vm87, %v69
    %89 = vrot.lane.b32.xlu0 %v28, 126
    %v90 = vpop.permute.xlu0 %89
    %91 = vrot.lane.b32.xlu0 %v34, 126
    %v92 = vpop.permute.xlu0 %91
    %93 = vrot.lane.b32.xlu0 %v29, 126
    %v94 = vpop.permute.xlu0 %93
    %95 = vrot.lane.b32.xlu0 %v35, 126
    %v96 = vpop.permute.xlu0 %95
    %97 = vrot.lane.b32.xlu0 %v30, 126
    %v98 = vpop.permute.xlu0 %97
    %99 = vrot.lane.b32.xlu0 %v50, 126
    %v100 = vpop.permute.xlu0 %99
    %vm101 = vcmask 1031168
    %v102 = vsel %vm101, %v90, %v92
    %v103 = vsel %vm101, %v92, %v94
    %v104 = vsel %vm101, %v94, %v96
    %v105 = vsel %vm101, %v96, %v98
    %v106 = vsel %vm101, %v98, %v100
    %113 = vst [vmem:[#allocation2 + $0x30] sm:$0xf] %v102
    %114 = vst [vmem:[#allocation2 + $0x38] sm:$0xf] %v103
    %115 = vst [vmem:[#allocation2 + $0x40] sm:$0xf] %v104
    %116 = vst [vmem:[#allocation2 + $0x48] sm:$0xf] %v105
    %117 = vst [vmem:[#allocation2 + $0x50] sm:$0xf] %v106
    %118 = vst.msk [vmem:[#allocation2 + $0x58] sm:$0xf] %vm45, %v100
    %119 = vrot.lane.b32.xlu0 %v52, 110
    %v120 = vpop.permute.xlu0 %119
    %121 = vrot.lane.b32.xlu0 %v53, 110
    %v122 = vpop.permute.xlu0 %121
    %123 = vrot.lane.b32.xlu0 %v54, 110
    %v124 = vpop.permute.xlu0 %123
    %125 = vrot.lane.b32.xlu0 %v55, 110
    %v126 = vpop.permute.xlu0 %125
    %127 = vrot.lane.b32.xlu0 %v56, 110
    %v128 = vpop.permute.xlu0 %127
    %129 = vrot.lane.b32.xlu0 %v57, 110
    %v130 = vpop.permute.xlu0 %129
    %vm131 = vcmask 900096
    %v132 = vsel %vm131, %v120, %v122
    %v133 = vsel %vm131, %v122, %v124
    %v134 = vsel %vm131, %v124, %v126
    %v135 = vsel %vm131, %v126, %v128
    %v136 = vsel %vm131, %v128, %v130
    %143 = vst [vmem:[#allocation2 + $0x30] sm:$0xf0] %v132
    %144 = vst [vmem:[#allocation2 + $0x38] sm:$0xf0] %v133
    %145 = vst [vmem:[#allocation2 + $0x40] sm:$0xf0] %v134
    %146 = vst [vmem:[#allocation2 + $0x48] sm:$0xf0] %v135
    %147 = vst [vmem:[#allocation2 + $0x50] sm:$0xf0] %v136
    %148 = vst.msk [vmem:[#allocation2 + $0x58] sm:$0xf0] %vm87, %v130
    %149 = vrot.lane.b32.xlu0 %v28, 109
    %v150 = vpop.permute.xlu0 %149
    %151 = vrot.lane.b32.xlu0 %v34, 109
    %v152 = vpop.permute.xlu0 %151
    %153 = vrot.lane.b32.xlu0 %v29, 109
    %v154 = vpop.permute.xlu0 %153
    %155 = vrot.lane.b32.xlu0 %v35, 109
    %v156 = vpop.permute.xlu0 %155
    %157 = vrot.lane.b32.xlu0 %v30, 109
    %v158 = vpop.permute.xlu0 %157
    %159 = vrot.lane.b32.xlu0 %v50, 109
    %v160 = vpop.permute.xlu0 %159
    %vm161 = vcmask 891904
    %v162 = vsel %vm161, %v150, %v152
    %v163 = vsel %vm161, %v152, %v154
    %v164 = vsel %vm161, %v154, %v156
    %v165 = vsel %vm161, %v156, %v158
    %v166 = vsel %vm161, %v158, %v160
    %173 = vst [vmem:[#allocation2 + $0x60] sm:$0xf] %v162
    %174 = vst [vmem:[#allocation2 + $0x68] sm:$0xf] %v163
    %175 = vst [vmem:[#allocation2 + $0x70] sm:$0xf] %v164
    %176 = vst [vmem:[#allocation2 + $0x78] sm:$0xf] %v165
    %177 = vst [vmem:[#allocation2 + $0x80] sm:$0xf] %v166
    %178 = vst.msk [vmem:[#allocation2 + $0x88] sm:$0xf] %vm45, %v160
    %179 = vrot.lane.b32.xlu0 %v52, 108
    %v180 = vpop.permute.xlu0 %179
    %181 = vrot.lane.b32.xlu0 %v53, 108
    %v182 = vpop.permute.xlu0 %181
    %183 = vrot.lane.b32.xlu0 %v54, 108
    %v184 = vpop.permute.xlu0 %183
    %185 = vrot.lane.b32.xlu0 %v55, 108
    %v186 = vpop.permute.xlu0 %185
    %187 = vrot.lane.b32.xlu0 %v56, 108
    %v188 = vpop.permute.xlu0 %187
    %189 = vrot.lane.b32.xlu0 %v57, 108
    %v190 = vpop.permute.xlu0 %189
    %vm191 = vcmask 883712
    %v192 = vsel %vm191, %v180, %v182
    %v193 = vsel %vm191, %v182, %v184
    %v194 = vsel %vm191, %v184, %v186
    %v195 = vsel %vm191, %v186, %v188
    %v196 = vsel %vm191, %v188, %v190
    %203 = vst [vmem:[#allocation2 + $0x60] sm:$0xf0] %v192
    %204 = vst [vmem:[#allocation2 + $0x68] sm:$0xf0] %v193
    %205 = vst [vmem:[#allocation2 + $0x70] sm:$0xf0] %v194
    %206 = vst [vmem:[#allocation2 + $0x78] sm:$0xf0] %v195
    %207 = vst [vmem:[#allocation2 + $0x80] sm:$0xf0] %v196
    %208 = vst.msk [vmem:[#allocation2 + $0x88] sm:$0xf0] %vm87, %v190
    %209 = vrot.lane.b32.xlu0 %v28, 92
    %v210 = vpop.permute.xlu0 %209
    %211 = vrot.lane.b32.xlu0 %v34, 92
    %v212 = vpop.permute.xlu0 %211
    %213 = vrot.lane.b32.xlu0 %v29, 92
    %v214 = vpop.permute.xlu0 %213
    %215 = vrot.lane.b32.xlu0 %v35, 92
    %v216 = vpop.permute.xlu0 %215
    %217 = vrot.lane.b32.xlu0 %v30, 92
    %v218 = vpop.permute.xlu0 %217
    %219 = vrot.lane.b32.xlu0 %v50, 92
    %v220 = vpop.permute.xlu0 %219
    %vm221 = vcmask 752640
    %v222 = vsel %vm221, %v210, %v212
    %v223 = vsel %vm221, %v212, %v214
    %v224 = vsel %vm221, %v214, %v216
    %v225 = vsel %vm221, %v216, %v218
    %v226 = vsel %vm221, %v218, %v220
    %233 = vst [vmem:[#allocation2 + $0x90] sm:$0xf] %v222
    %234 = vst [vmem:[#allocation2 + $0x98] sm:$0xf] %v223
    %235 = vst [vmem:[#allocation2 + $0xa0] sm:$0xf] %v224
    %236 = vst [vmem:[#allocation2 + $0xa8] sm:$0xf] %v225
    %237 = vst [vmem:[#allocation2 + $0xb0] sm:$0xf] %v226
    %238 = vst.msk [vmem:[#allocation2 + $0xb8] sm:$0xf] %vm45, %v220
    %239 = vrot.lane.b32.xlu0 %v52, 91
    %v240 = vpop.permute.xlu0 %239
    %241 = vrot.lane.b32.xlu0 %v53, 91
    %v242 = vpop.permute.xlu0 %241
    %243 = vrot.lane.b32.xlu0 %v54, 91
    %v244 = vpop.permute.xlu0 %243
    %245 = vrot.lane.b32.xlu0 %v55, 91
    %v246 = vpop.permute.xlu0 %245
    %247 = vrot.lane.b32.xlu0 %v56, 91
    %v248 = vpop.permute.xlu0 %247
    %249 = vrot.lane.b32.xlu0 %v57, 91
    %v250 = vpop.permute.xlu0 %249
    %vm251 = vcmask 744448
    %v252 = vsel %vm251, %v240, %v242
    %v253 = vsel %vm251, %v242, %v244
    %v254 = vsel %vm251, %v244, %v246
    %v255 = vsel %vm251, %v246, %v248
    %v256 = vsel %vm251, %v248, %v250
    %263 = vst [vmem:[#allocation2 + $0x90] sm:$0xf0] %v252
    %264 = vst [vmem:[#allocation2 + $0x98] sm:$0xf0] %v253
    %265 = vst [vmem:[#allocation2 + $0xa0] sm:$0xf0] %v254
    %266 = vst [vmem:[#allocation2 + $0xa8] sm:$0xf0] %v255
    %267 = vst [vmem:[#allocation2 + $0xb0] sm:$0xf0] %v256
    %268 = vst.msk [vmem:[#allocation2 + $0xb8] sm:$0xf0] %vm87, %v250
    %269 = vrot.lane.b32.xlu0 %v28, 90
    %v270 = vpop.permute.xlu0 %269
    %271 = vrot.lane.b32.xlu0 %v34, 90
    %v272 = vpop.permute.xlu0 %271
    %273 = vrot.lane.b32.xlu0 %v29, 90
    %v274 = vpop.permute.xlu0 %273
    %275 = vrot.lane.b32.xlu0 %v35, 90
    %v276 = vpop.permute.xlu0 %275
    %277 = vrot.lane.b32.xlu0 %v30, 90
    %v278 = vpop.permute.xlu0 %277
    %279 = vrot.lane.b32.xlu0 %v50, 90
    %v280 = vpop.permute.xlu0 %279
    %vm281 = vcmask 736256
    %v282 = vsel %vm281, %v270, %v272
    %v283 = vsel %vm281, %v272, %v274
    %v284 = vsel %vm281, %v274, %v276
    %v285 = vsel %vm281, %v276, %v278
    %v286 = vsel %vm281, %v278, %v280
    %293 = vst [vmem:[#allocation2 + $0xc0] sm:$0xf] %v282
    %294 = vst [vmem:[#allocation2 + $0xc8] sm:$0xf] %v283
    %295 = vst [vmem:[#allocation2 + $0xd0] sm:$0xf] %v284
    %296 = vst [vmem:[#allocation2 + $0xd8] sm:$0xf] %v285
    %297 = vst [vmem:[#allocation2 + $0xe0] sm:$0xf] %v286
    %298 = vst.msk [vmem:[#allocation2 + $0xe8] sm:$0xf] %vm45, %v280
    %v299 = vld [vmem:[#allocation2] sm:$0xff]
    %v300 = vld [vmem:[#allocation2 + $0x8] sm:$0xff]
    %v301 = vld [vmem:[#allocation2 + $0x10] sm:$0xff]
    %v302 = vld [vmem:[#allocation2 + $0x18] sm:$0xff]
    %v303 = vld [vmem:[#allocation2 + $0x20] sm:$0xff]
    %v304 = vld [vmem:[#allocation2 + $0x28] sm:$0xff]
    %v305 = vld [vmem:[#allocation2 + $0x30] sm:$0xff]
    %v306 = vld [vmem:[#allocation2 + $0x38] sm:$0xff]
    %v307 = vld [vmem:[#allocation2 + $0x40] sm:$0xff]
    %v308 = vld [vmem:[#allocation2 + $0x48] sm:$0xff]
    %v309 = vld [vmem:[#allocation2 + $0x50] sm:$0xff]
    %v310 = vld [vmem:[#allocation2 + $0x58] sm:$0xff]
    %v311 = vld [vmem:[#allocation2 + $0x60] sm:$0xff]
    %v312 = vld [vmem:[#allocation2 + $0x68] sm:$0xff]
    %v313 = vld [vmem:[#allocation2 + $0x70] sm:$0xff]
    %v314 = vld [vmem:[#allocation2 + $0x78] sm:$0xff]
    %v315 = vld [vmem:[#allocation2 + $0x80] sm:$0xff]
    %v316 = vld [vmem:[#allocation2 + $0x88] sm:$0xff]
    %v317 = vld [vmem:[#allocation2 + $0x90] sm:$0xff]
    %v318 = vld [vmem:[#allocation2 + $0x98] sm:$0xff]
    %v319 = vld [vmem:[#allocation2 + $0xa0] sm:$0xff]
    %v320 = vld [vmem:[#allocation2 + $0xa8] sm:$0xff]
    %v321 = vld [vmem:[#allocation2 + $0xb0] sm:$0xff]
    %v322 = vld [vmem:[#allocation2 + $0xb8] sm:$0xff]
    %v323 = vld [vmem:[#allocation2 + $0xc0] sm:$0xf]
    %v324 = vld [vmem:[#allocation2 + $0xc8] sm:$0xf]
    %v325 = vld [vmem:[#allocation2 + $0xd0] sm:$0xf]
    %v326 = vld [vmem:[#allocation2 + $0xd8] sm:$0xf]
    %v327 = vld [vmem:[#allocation2 + $0xe0] sm:$0xf]
    %v328 = vld [vmem:[#allocation2 + $0xe8] sm:$0xf]
    %v329 = vpack.c.bf16 %v305, %v299
    %v330 = vpack.c.bf16 %v306, %v300
    %v331 = vpack.c.bf16 %v307, %v301
    %v332 = vpack.c.bf16 %v308, %v302
    %v333 = vpack.c.bf16 %v309, %v303
    %v334 = vpack.c.bf16 %v310, %v304
    %v335 = vpack.c.bf16 %v317, %v311
    %v336 = vpack.c.bf16 %v318, %v312
    %v337 = vpack.c.bf16 %v319, %v313
    %v338 = vpack.c.bf16 %v320, %v314
    %v339 = vpack.c.bf16 %v321, %v315
    %v340 = vpack.c.bf16 %v322, %v316
    %v341 = vpack.c.bf16 %v323, %v323
    %v342 = vpack.c.bf16 %v324, %v324
    %v343 = vpack.c.bf16 %v325, %v325
    %v344 = vpack.c.bf16 %v326, %v326
    %v345 = vpack.c.bf16 %v327, %v327
    %v346 = vpack.c.bf16 %v328, %v328
    %v347 = vld [vmem:[%s1] sm:$0xf]
    %v348 = vld [vmem:[%s2] sm:$0xff]
    %350 = vset.pattern.permute.xlu0 0
    %351 = vperm.xlu0 %350, %v348
    %v352 = vpop.permute.xlu0 %351
    %vm354 = vcmask 293888
    %v356 = vsel %vm354, %v347, 0
    %vm358 = vcmask 1041408
    %v360 = vsel %vm358, %v341, 0
    %v363 = vsel %vm358, %v342, 0
    %v366 = vsel %vm358, %v343, 0
    %v369 = vsel %vm358, %v344, 0
    %v372 = vsel %vm358, %v345, 0
    %v375 = vsel %vm358, %v346, 0
    %377 = vmatprep.subr.bf16.mxu0 %v330
    %378 = vmatpush1.bf16.msra.mxu0 %v329
    %379 = vmatprep.subr.bf16.mxu0 %v336
    %380 = vmatpush1.bf16.msra.mxu0 %v335
    %381 = vmatprep.subr.bf16.mxu0 %v363
    %382 = vmatpush1.bf16.msra.mxu0 %v360
    %383 = vmatprep.subr.bf16.mxu0 0
    %384 = vmatpush1.bf16.msra.mxu0 0
    %385 = vmatprep.subr.bf16.mxu0 0
    %386 = vmatpush1.bf16.msra.mxu0 0
    %387 = vmatprep.subr.bf16.mxu0 0
    %388 = vmatpush1.bf16.msra.mxu0 0
    %389 = vmatprep.subr.bf16.mxu0 0
    %390 = vmatpush1.bf16.msra.mxu0 0
    %391 = vmatprep.subr.bf16.mxu0 0
    %392 = vmatpush1.bf16.msra.mxu0 0
    %393 = vmatprep.subr.bf16.mxu0 0
    %394 = vmatpush1.bf16.msra.mxu0 0
    %395 = vmatprep.subr.bf16.mxu0 0
    %396 = vmatpush1.bf16.msra.mxu0 0
    %397 = vmatprep.subr.bf16.mxu0 0
    %398 = vmatpush1.bf16.msra.mxu0 0
    %399 = vmatprep.subr.bf16.mxu0 0
    %400 = vmatpush1.bf16.msra.mxu0 0
    %401 = vmatprep.subr.bf16.mxu0 0
    %402 = vmatpush1.bf16.msra.mxu0 0
    %403 = vmatprep.subr.bf16.mxu0 0
    %404 = vmatpush1.bf16.msra.mxu0 0
    %405 = vmatprep.subr.bf16.mxu0 0
    %406 = vmatpush1.bf16.msra.mxu0 0
    %407 = vmatprep.subr.bf16.mxu0 0
    %408 = vmatpush1.bf16.msra.mxu0 0
    %409 = vmatprep.mubr.bf16.mxu0 0
    %410 = vmatmul.mubr.bf16.gmra.mrb[0].mxu0 %v356
    %v411 = vpop.f32.mrb[0].mxu0
    %v412 = vadd.f32 %v352, %v411
    %v413 = vpop.f32.mrb[0].mxu0
    %v414 = vadd.f32 %v352, %v413
    %v415 = vpop.f32.mrb[0].mxu0
    %v416 = vpop.f32.mrb[0].mxu0
    %417 = vdwg.mxu0
    %418 = vmatprep.subr.bf16.mxu0 %v332
    %419 = vmatpush1.bf16.msra.mxu0 %v331
    %420 = vmatprep.subr.bf16.mxu0 %v338
    %421 = vmatpush1.bf16.msra.mxu0 %v337
    %422 = vmatprep.subr.bf16.mxu0 %v369
    %423 = vmatpush1.bf16.msra.mxu0 %v366
    %424 = vmatprep.subr.bf16.mxu0 0
    %425 = vmatpush1.bf16.msra.mxu0 0
    %426 = vmatprep.subr.bf16.mxu0 0
    %427 = vmatpush1.bf16.msra.mxu0 0
    %428 = vmatprep.subr.bf16.mxu0 0
    %429 = vmatpush1.bf16.msra.mxu0 0
    %430 = vmatprep.subr.bf16.mxu0 0
    %431 = vmatpush1.bf16.msra.mxu0 0
    %432 = vmatprep.subr.bf16.mxu0 0
    %433 = vmatpush1.bf16.msra.mxu0 0
    %434 = vmatprep.subr.bf16.mxu0 0
    %435 = vmatpush1.bf16.msra.mxu0 0
    %436 = vmatprep.subr.bf16.mxu0 0
    %437 = vmatpush1.bf16.msra.mxu0 0
    %438 = vmatprep.subr.bf16.mxu0 0
    %439 = vmatpush1.bf16.msra.mxu0 0
    %440 = vmatprep.subr.bf16.mxu0 0
    %441 = vmatpush1.bf16.msra.mxu0 0
    %442 = vmatprep.subr.bf16.mxu0 0
    %443 = vmatpush1.bf16.msra.mxu0 0
    %444 = vmatprep.subr.bf16.mxu0 0
    %445 = vmatpush1.bf16.msra.mxu0 0
    %446 = vmatprep.subr.bf16.mxu0 0
    %447 = vmatpush1.bf16.msra.mxu0 0
    %448 = vmatprep.subr.bf16.mxu0 0
    %449 = vmatpush1.bf16.msra.mxu0 0
    %450 = vmatprep.mubr.bf16.mxu0 0
    %451 = vmatmul.mubr.bf16.gmra.mrb[0].mxu0 %v356
    %v452 = vpop.f32.mrb[0].mxu0
    %v453 = vadd.f32 %v352, %v452
    %v454 = vpop.f32.mrb[0].mxu0
    %v455 = vadd.f32 %v352, %v454
    %v456 = vpop.f32.mrb[0].mxu0
    %v457 = vpop.f32.mrb[0].mxu0
    %458 = vdwg.mxu0
    %459 = vmatprep.subr.bf16.mxu0 %v334
    %460 = vmatpush1.bf16.msra.mxu0 %v333
    %461 = vmatprep.subr.bf16.mxu0 %v340
    %462 = vmatpush1.bf16.msra.mxu0 %v339
    %463 = vmatprep.subr.bf16.mxu0 %v375
    %464 = vmatpush1.bf16.msra.mxu0 %v372
    %465 = vmatprep.subr.bf16.mxu0 0
    %466 = vmatpush1.bf16.msra.mxu0 0
    %467 = vmatprep.subr.bf16.mxu0 0
    %468 = vmatpush1.bf16.msra.mxu0 0
    %469 = vmatprep.subr.bf16.mxu0 0
    %470 = vmatpush1.bf16.msra.mxu0 0
    %471 = vmatprep.subr.bf16.mxu0 0
    %472 = vmatpush1.bf16.msra.mxu0 0
    %473 = vmatprep.subr.bf16.mxu0 0
    %474 = vmatpush1.bf16.msra.mxu0 0
    %475 = vmatprep.subr.bf16.mxu0 0
    %476 = vmatpush1.bf16.msra.mxu0 0
    %477 = vmatprep.subr.bf16.mxu0 0
    %478 = vmatpush1.bf16.msra.mxu0 0
    %479 = vmatprep.subr.bf16.mxu0 0
    %480 = vmatpush1.bf16.msra.mxu0 0
    %481 = vmatprep.subr.bf16.mxu0 0
    %482 = vmatpush1.bf16.msra.mxu0 0
    %483 = vmatprep.subr.bf16.mxu0 0
    %484 = vmatpush1.bf16.msra.mxu0 0
    %485 = vmatprep.subr.bf16.mxu0 0
    %486 = vmatpush1.bf16.msra.mxu0 0
    %487 = vmatprep.subr.bf16.mxu0 0
    %488 = vmatpush1.bf16.msra.mxu0 0
    %489 = vmatprep.subr.bf16.mxu0 0
    %490 = vmatpush1.bf16.msra.mxu0 0
    %491 = vmatprep.mubr.bf16.mxu0 0
    %492 = vmatmul.mubr.bf16.gmra.mrb[0].mxu0 %v356
    %v493 = vpop.f32.mrb[0].mxu0
    %v494 = vadd.f32 %v352, %v493
    %v495 = vpop.f32.mrb[0].mxu0
    %v496 = vadd.f32 %v352, %v495
    %v497 = vpop.f32.mrb[0].mxu0
    %v498 = vpop.f32.mrb[0].mxu0
    %499 = vdwg.mxu0
    %v500 = vmax.f32 %v412, 0.0
    %v501 = vmax.f32 %v414, 0.0
    %v502 = vmax.f32 %v453, 0.0
    %v503 = vmax.f32 %v455, 0.0
    %v504 = vmax.f32 %v494, 0.0
    %v505 = vmax.f32 %v496, 0.0
    %506 = vst [vmem:[#allocation6] sm:$0xff] %v500
    %507 = vst [vmem:[#allocation6 + $0x8] sm:$0xff] %v501
    %508 = vst [vmem:[#allocation6 + $0x10] sm:$0xff] %v502
    %509 = vst [vmem:[#allocation6 + $0x18] sm:$0xff] %v503
    %510 = vst [vmem:[#allocation6 + $0x20] sm:$0xff] %v504
    %vm511 = vcmask 64512
    %512 = vst.msk [vmem:[#allocation6 + $0x28] sm:$0xff] %vm511, %v505
    // Predicated region
    $region18: #{tpu_custom_call.1} parent=1 // pred_check
      _
    $region19: #{tpu_custom_call.1} parent=1 // pred_check_branch
      %514 = sbr.rel (0) target = $region21
    $region20: #{tpu_custom_call.1} parent=1 // pred_region
      %s516 = ssub.s32 768, 768
      %517 = vsyncadd [#allocation5], %s516
      %s519 = sshll.u32 [#allocation6], 4
      %s520 = int_to_ptr.vmem [resolvable:$true] %s519
      %522 = dma.vmem_to_hbm [thread:$0]  %s520, 768, %s3, [#allocation5]
    $region21: #{tpu_custom_call.1} parent=1 // pred_fallthru
      _
    // Predicated region
    $region22: #{tpu_custom_call.1} parent=1 // pred_check
      _
    $region23: #{tpu_custom_call.1} parent=1 // pred_check_branch
      %524 = sbr.rel (0) target = $region25
    $region24: #{tpu_custom_call.1} parent=1 // pred_region
      %525 = dma.done [#allocation5], 768
    $region25: #{tpu_custom_call.1} parent=1 // pred_fallthru
      _
    %526 = vsyncpa [#allocation4], 1
    %527 = vsyncpa [#allocation5], 1

</llo_original>
